<compile_context>
chip_gen: v5e
topology: v5e:2x2
jax: 0.10.0
libtpu: 0.0.40
codegen_flags: <defaults>
</compile_context>

<pallas_src>
import math
from functools import partial

import jax
import jax.numpy as jnp
from jax import lax
from jax.experimental import pallas as pl
from jax.experimental.pallas import tpu as pltpu


# ---------------------------------------------------------------------------
# Filter construction (parameter setup — plain JAX, runs at trace time)
# ---------------------------------------------------------------------------
def b_spline(x):
    # Literal translation of the degree-10 B-spline expression.
    return (
        -462.0 * (x - 0.5) ** 10 * jnp.sign(0.5 - x)
        + 330.0 * (x - 1.5) ** 10 * jnp.sign(1.5 - x)
        - 165.0 * (x - 2.5) ** 10 * jnp.sign(2.5 - x)
        + 55.0 * (x - 3.5) ** 10 * jnp.sign(3.5 - x)
        - 11.0 * (x - 4.5) ** 10 * jnp.sign(4.5 - x)
        + (x - 5.5) ** 10 * jnp.sign(5.5 - x)
        - 462.0 * (x + 0.5) ** 10 * jnp.sign(x + 0.5)
        + 165.0 * (3.0 + 2.0 * x) ** 10 * jnp.sign(x + 1.5) / 512.0
        - 165.0 * (x + 2.5) ** 10 * jnp.sign(x + 2.5)
        + 55.0 * (x + 3.5) ** 10 * jnp.sign(x + 3.5)
        - 11.0 * (x + 4.5) ** 10 * jnp.sign(x + 4.5)
        + (x + 5.5) ** 10 * jnp.sign(x + 5.5)
    ) / 7257600.0


def kernel_maker(s, weight):
    """s is a Python float, weight is (c_out, c_in, kernel_size)."""
    c_out, c_in, K = weight.shape
    eff = 2 * int((K // 2 + 1) * s) + K % 2
    if eff == 1:
        return jnp.mean(weight, axis=-1, keepdims=True)  # (c_out, c_in, 1)
    xg = jnp.arange(eff, dtype=jnp.float32).reshape(eff, 1) - eff // 2
    tau = s * (jnp.arange(K, dtype=jnp.float32) - K // 2)
    # (c_out, c_in, 1, K) * (eff, K) -> sum over K -> (c_out, c_in, eff)
    return jnp.sum(weight[:, :, None, :] * b_spline(xg - tau), axis=-1)


def _k_s_min(kernel_size):
    # Matches (-log2((kernel_size + 2) // 2) - 1).int()  (truncation toward zero).
    return int(-math.log2((kernel_size + 2) // 2) - 1)


def _ceil_to(x, m):
    return -(-x // m) * m


# ---------------------------------------------------------------------------
# Pallas kernel body (one fused MXU matmul per (batch-group, N-tile) grid step)
# ---------------------------------------------------------------------------
def _make_kernel(G, c_in_p, K_max, TN, W_al, HALO):
    has_halo = HALO > 0

    def kernel(*refs):
        if has_halo:
            xm_ref, xh_ref, psi_ref, out_ref, win_scr, rhs_scr = refs
        else:
            xm_ref, psi_ref, out_ref, rhs_scr = refs

        for g in range(G):                       # static unroll, G is small
            if has_halo:
                # Assemble the (c_in_p, TN+HALO) window from the main tile and the
                # 128-aligned halo tile of the right neighbour (both lane-aligned).
                win_scr[:, :TN] = xm_ref[g]
                win_scr[:, TN:TN + HALO] = xh_ref[g]
                xt = win_scr[...]                # (c_in_p, W_al) bf16
            else:
                xt = xm_ref[g]                   # (c_in_p, W_al) bf16

            # im2col RHS written straight into VMEM scratch: row block k holds
            # window[:, k:k+TN]; (k, i)-ordered rows match psi_flat's columns.
            # Static lane slices -> XLU lane rotations, no unaligned DMA.
            for k in range(K_max):               # static unroll, K_max is small
                rhs_scr[k * c_in_p:(k + 1) * c_in_p,
                        g * TN:(g + 1) * TN] = xt[:, k:k + TN]

        # One MXU matmul for all scales, output channels, taps and G batches.
        res = jnp.dot(psi_ref[...], rhs_scr[...],
                      preferred_element_type=jnp.float32)      # (RO, G*TN) f32
        for g in range(G):
            out_ref[g] = res[:, g * TN:(g + 1) * TN]           # lane-aligned slices

    return kernel


# ---------------------------------------------------------------------------
# Forward pass
# ---------------------------------------------------------------------------
@partial(jax.jit, static_argnames=("kernel_size", "k_s_max"))
def lifting_convolution_forward(x, weight, *, kernel_size, k_s_max):
    Batch, c_in, N = x.shape
    c_out = weight.shape[0]
    K = kernel_size
    assert K % 2 == 1, "even kernel_size is unsupported (reference output length changes)"

    s_list = [2.0 ** p for p in range(_k_s_min(K), k_s_max + 1)]
    S = len(s_list)
    assert S >= 1

    # ---- Per-scale filters psi_s / s, zero-padded (centered) to a common width.
    psis = [kernel_maker(s, weight) / s for s in s_list]        # (c_out, c_in, eff_s)
    K_max = max(int(p.shape[-1]) for p in psis)
    assert K_max % 2 == 1
    pad_w = K_max // 2

    c_in_p = _ceil_to(c_in, 16)                 # bf16 sublane packing (16, 128)
    RO = c_out * S                              # fused output rows (scales x channels)
    RK = K_max * c_in_p                         # fused contraction dim (taps x channels)

    psi_pad = []
    for p in psis:
        eff = int(p.shape[-1])
        off = (K_max - eff) // 2
        buf = jnp.zeros((c_out, c_in_p, K_max), jnp.float32)
        buf = buf.at[:, :c_in, off:off + eff].set(p.astype(jnp.float32))
        psi_pad.append(buf)
    psi_pad = jnp.stack(psi_pad, axis=0)                        # (S, c_out, c_in_p, K_max)
    # Rows ordered (o, s) -> free reshape to (B, c_out, S, N); columns ordered (k, i)
    # to match the in-kernel im2col rows.  Cast to bf16 (MXU-native operands).
    psi_flat = jnp.transpose(psi_pad, (1, 0, 3, 2)).reshape(RO, RK).astype(jnp.bfloat16)

    # ---- N tiling (no TN=N fallback for awkward large N: pad up and crop instead).
    if N <= 1024:
        TN = N
    else:
        TN = 0
        for cand in (1024, 512, 256, 128):
            if N % cand == 0:
                TN = cand
                break
        if TN == 0:
            TN = 512                            # pad N up to a multiple of 512
    NT = _ceil_to(N, TN) // TN

    if NT > 1:
        HALO = _ceil_to(max(2 * pad_w, 1), 128)   # 128-aligned right halo
        if TN % HALO != 0:                        # very wide effective kernels
            TN = _ceil_to(TN, HALO)
            NT = _ceil_to(N, TN) // TN
        if NT == 1:
            HALO = 0
    else:
        HALO = 0

    N_eff = NT * TN
    if HALO:
        W_al = TN + HALO
        L = N_eff + HALO
    else:
        W_al = _ceil_to(TN + 2 * pad_w, 128)
        L = W_al

    # Guard against wrapped / out-of-window data leaking into the im2col rows.
    assert TN + K_max - 1 <= W_al, (TN, K_max, W_al)
    assert HALO == 0 or TN % HALO == 0, (TN, HALO)

    # ---- Batch grouping: widen the MXU lane dim to ~1024 (G*TN) per step.
    LANE_TARGET = 1024
    max_g = max(1, LANE_TARGET // TN)
    if TN % 128 != 0:
        max_g = 1                               # keep per-batch RHS column offsets aligned
    divs = [g for g in range(1, Batch + 1) if Batch % g == 0 and g <= max_g]
    G = divs[-1]
    if (Batch // G) * NT < 2:                   # keep >=2 grid steps (v7x has 2 TCs)
        for g in reversed(divs):
            if (Batch // g) * NT >= 2:
                G = g
                break

    # ---- Explicit per-step VMEM budget (v7x: 64 MiB physical; v5e: 16 MiB scoped default).
    def _vmem_bytes(g):
        return (2 * g * c_in_p * TN * 2                  # main window tiles (dbl-buffered, bf16)
                + 2 * g * c_in_p * HALO * 2              # halo tiles
                + 2 * RO * RK * 2                        # psi (dbl-buffered, bf16)
                + 2 * g * RO * TN * 4                    # out tiles (dbl-buffered, f32)
                + (c_in_p * W_al * 2 if HALO else 0)     # window-assembly scratch
                + RK * g * TN * 2                        # im2col RHS scratch (bf16)
                + RO * g * TN * 4)                       # dot result temp (f32)

    VMEM_BUDGET = 40 * 1024 * 1024
    while _vmem_bytes(G) > VMEM_BUDGET and G > 1:
        G = max(g for g in divs if g < G)
    assert _vmem_bytes(G) <= VMEM_BUDGET, (
        f"per-step VMEM working set {_vmem_bytes(G)} B exceeds budget; "
        "reduce c_out*S or the kernel width / tile the channel axis")
    vmem_limit = int(min(64 * 1024 * 1024, max(32 * 1024 * 1024, 2 * _vmem_bytes(G))))
    B_grp = Batch // G

    # ---- Input prep: single bf16 zero-pad pass (no im2col / window gather in HBM).
    x_bf = x.astype(jnp.bfloat16)
    x_pad = jnp.pad(x_bf, ((0, 0), (0, c_in_p - c_in), (pad_w, L - pad_w - N)))

    if HALO:
        in_specs = [
            pl.BlockSpec((G, c_in_p, TN), lambda b, t: (b, 0, t)),
            pl.BlockSpec((G, c_in_p, HALO), lambda b, t: (b, 0, (t + 1) * (TN // HALO))),
            pl.BlockSpec((RO, RK), lambda b, t: (0, 0)),
        ]
        operands = (x_pad, x_pad, psi_flat)
        scratch = [pltpu.VMEM((c_in_p, W_al), jnp.bfloat16),
                   pltpu.VMEM((RK, G * TN), jnp.bfloat16)]
    else:
        in_specs = [
            pl.BlockSpec((G, c_in_p, W_al), lambda b, t: (b, 0, t)),
            pl.BlockSpec((RO, RK), lambda b, t: (0, 0)),
        ]
        operands = (x_pad, psi_flat)
        scratch = [pltpu.VMEM((RK, G * TN), jnp.bfloat16)]

    cost = pl.CostEstimate(
        flops=2 * Batch * RO * RK * N_eff,
        transcendentals=0,
        bytes_accessed=int((2 if HALO else 1) * Batch * c_in_p * L * 2
                           + RO * RK * 2 + Batch * RO * N_eff * 4),
    )

    out_raw = pl.pallas_call(
        _make_kernel(G, c_in_p, K_max, TN, W_al, HALO),
        out_shape=jax.ShapeDtypeStruct((Batch, RO, N_eff), jnp.float32),
        grid=(B_grp, NT),
        in_specs=in_specs,
        out_specs=pl.BlockSpec((G, RO, TN), lambda b, t: (b, 0, t)),
        scratch_shapes=scratch,
        compiler_params=pltpu.CompilerParams(
            dimension_semantics=("parallel", "parallel"),
            vmem_limit_bytes=vmem_limit),
        cost_estimate=cost,
    )(*operands)

    if N_eff > N:                       # only for awkward N that was padded up
        out_raw = out_raw[:, :, :N]
    # Free contiguous reshape (rows were laid out as (o, s)).
    return out_raw.reshape(Batch, c_out, S, N)


# ---------------------------------------------------------------------------
# Pure-JAX reference (for a silent self-check)
# ---------------------------------------------------------------------------
def lifting_convolution_reference(x, weight, *, kernel_size, k_s_max):
    s_list = [2.0 ** p for p in range(_k_s_min(kernel_size), k_s_max + 1)]
    outs = []
    for s in s_list:
        psi = kernel_maker(s, weight) / s
        eff = int(psi.shape[-1])
        o = lax.conv_general_dilated(
            x, psi, window_strides=(1,), padding=[(eff // 2, eff // 2)],
            dimension_numbers=("NCH", "OIH", "NCH"),
        )
        outs.append(o[:, :, None, :])
    return jnp.concatenate(outs, axis=2)


# ---------------------------------------------------------------------------
if __name__ == "__main__":
    def _run_case(Batch, C_IN, N, C_OUT, KSIZE, K_S_MAX, kx, kw):
        x = jax.random.normal(kx, (Batch, C_IN, N), dtype=jnp.float32)
        bound = math.sqrt(6.0 / (C_IN * KSIZE + C_OUT * KSIZE))   # xavier_uniform bound
        w = jax.random.uniform(kw, (C_OUT, C_IN, KSIZE), jnp.float32, -bound, bound)

        out = jax.block_until_ready(
            lifting_convolution_forward(x, w, kernel_size=KSIZE, k_s_max=K_S_MAX))
        ref = jax.block_until_ready(
            lifting_convolution_reference(x, w, kernel_size=KSIZE, k_s_max=K_S_MAX))

        S = K_S_MAX - _k_s_min(KSIZE) + 1
        assert out.shape == ref.shape == (Batch, C_OUT, S, N), (out.shape, ref.shape)
        max_ref = float(jnp.max(jnp.abs(ref)))
        max_err = float(jnp.max(jnp.abs(out - ref)))
        # bf16 operands / f32 accumulation -> relative tolerance.
        tol = 5e-2 * max(1.0, max_ref)
        assert max_err < tol, f"mismatch vs reference: {max_err} (tol {tol})"

    key = jax.random.PRNGKey(0)
    k1, k2, k3, k4 = jax.random.split(key, 4)

    # Small case (matches the module's forward): single N tile, per-batch grid steps.
    _run_case(2, 4, 128, 6, 3, 0, k1, k2)
    # Larger case: exercises the N-tiling + halo path and the batch-fused (G=2) matmul.
    _run_case(2, 3, 1536, 5, 3, 1, k3, k4)

    print("KERNEL_OK")
</pallas_src>

<mosaic_0001>
module attributes {stable_mosaic.version = 11 : i64} {
  func.func @kernel(%arg0: i32, %arg1: i32, %arg2: memref<1x16x256xbf16, #tpu.memory_space<vmem>>, %arg3: memref<18x80xbf16, #tpu.memory_space<vmem>>, %arg4: memref<1x18x128xf32, #tpu.memory_space<vmem>>, %arg5: memref<80x128xbf16, #tpu.memory_space<vmem>>) attributes {dimension_semantics = [#tpu.dimension_semantics<parallel>, #tpu.dimension_semantics<parallel>], iteration_bounds = array<i64: 2, 1>, scalar_prefetch = 0 : i64, scratch_operands = 1 : i64, tpu.core_type = #tpu.core_type<tc>, window_params = [{transform_indices = @transform_0, window_bounds = array<i64: 1, 16, 256>}, {pipeline_mode = #tpu.pipeline_mode<synchronous>, transform_indices = @transform_1, window_bounds = array<i64: 18, 80>}, {transform_indices = @transform_2, window_bounds = array<i64: 1, 18, 128>}]} {
    %c0 = arith.constant 0 : index
    %c0_0 = arith.constant 0 : index
    %c0_1 = arith.constant 0 : index
    %0 = vector.load %arg2[%c0, %c0_0, %c0_1] : memref<1x16x256xbf16, #tpu.memory_space<vmem>>, vector<1x16x256xbf16>
    %1 = vector.shape_cast %0 : vector<1x16x256xbf16> to vector<16x256xbf16>
    %2 = vector.extract_strided_slice %1 {offsets = [0, 0], sizes = [16, 128], strides = [1, 1]} : vector<16x256xbf16> to vector<16x128xbf16>
    %c0_2 = arith.constant 0 : index
    %c0_3 = arith.constant 0 : index
    %3 = vector.load %arg5[%c0_2, %c0_3] : memref<80x128xbf16, #tpu.memory_space<vmem>>, vector<16x128xbf16>
    tpu.vector_store %arg5[%c0_2, %c0_3], %2 {strides = array<i32>} : memref<80x128xbf16, #tpu.memory_space<vmem>>, vector<16x128xbf16>,
    %4 = vector.extract_strided_slice %1 {offsets = [0, 1], sizes = [16, 128], strides = [1, 1]} : vector<16x256xbf16> to vector<16x128xbf16>
    %c16 = arith.constant 16 : index
    %c0_4 = arith.constant 0 : index
    %5 = vector.load %arg5[%c16, %c0_4] : memref<80x128xbf16, #tpu.memory_space<vmem>>, vector<16x128xbf16>
    tpu.vector_store %arg5[%c16, %c0_4], %4 {strides = array<i32>} : memref<80x128xbf16, #tpu.memory_space<vmem>>, vector<16x128xbf16>,
    %6 = vector.extract_strided_slice %1 {offsets = [0, 2], sizes = [16, 128], strides = [1, 1]} : vector<16x256xbf16> to vector<16x128xbf16>
    %c32 = arith.constant 32 : index
    %c0_5 = arith.constant 0 : index
    %7 = vector.load %arg5[%c32, %c0_5] : memref<80x128xbf16, #tpu.memory_space<vmem>>, vector<16x128xbf16>
    tpu.vector_store %arg5[%c32, %c0_5], %6 {strides = array<i32>} : memref<80x128xbf16, #tpu.memory_space<vmem>>, vector<16x128xbf16>,
    %8 = vector.extract_strided_slice %1 {offsets = [0, 3], sizes = [16, 128], strides = [1, 1]} : vector<16x256xbf16> to vector<16x128xbf16>
    %c48 = arith.constant 48 : index
    %c0_6 = arith.constant 0 : index
    %9 = vector.load %arg5[%c48, %c0_6] : memref<80x128xbf16, #tpu.memory_space<vmem>>, vector<16x128xbf16>
    tpu.vector_store %arg5[%c48, %c0_6], %8 {strides = array<i32>} : memref<80x128xbf16, #tpu.memory_space<vmem>>, vector<16x128xbf16>,
    %10 = vector.extract_strided_slice %1 {offsets = [0, 4], sizes = [16, 128], strides = [1, 1]} : vector<16x256xbf16> to vector<16x128xbf16>
    %c64 = arith.constant 64 : index
    %c0_7 = arith.constant 0 : index
    %11 = vector.load %arg5[%c64, %c0_7] : memref<80x128xbf16, #tpu.memory_space<vmem>>, vector<16x128xbf16>
    tpu.vector_store %arg5[%c64, %c0_7], %10 {strides = array<i32>} : memref<80x128xbf16, #tpu.memory_space<vmem>>, vector<16x128xbf16>,
    %c0_8 = arith.constant 0 : index
    %c0_9 = arith.constant 0 : index
    %12 = vector.load %arg3[%c0_8, %c0_9] : memref<18x80xbf16, #tpu.memory_space<vmem>>, vector<18x80xbf16>
    %c0_10 = arith.constant 0 : index
    %c0_11 = arith.constant 0 : index
    %13 = vector.load %arg5[%c0_10, %c0_11] : memref<80x128xbf16, #tpu.memory_space<vmem>>, vector<80x128xbf16>
    %cst = arith.constant dense<0.000000e+00> : vector<18x128xf32>
    %14 = tpu.matmul %12, %13, %cst {dimension_numbers = #tpu.dot_dimension_numbers<[1], [0], [0], [1], [0, 0, 1, 1], [], []>} : vector<18x80xbf16>, vector<80x128xbf16>, vector<18x128xf32> -> vector<18x128xf32>
    %c0_12 = arith.constant 0 : index
    %c0_13 = arith.constant 0 : index
    %c0_14 = arith.constant 0 : index
    %15 = vector.load %arg4[%c0_12, %c0_13, %c0_14] : memref<1x18x128xf32, #tpu.memory_space<vmem>>, vector<1x18x128xf32>
    %16 = vector.shape_cast %15 : vector<1x18x128xf32> to vector<18x128xf32>
    %17 = vector.shape_cast %14 : vector<18x128xf32> to vector<1x18x128xf32>
    tpu.vector_store %arg4[%c0_12, %c0_13, %c0_14], %17 {strides = array<i32>} : memref<1x18x128xf32, #tpu.memory_space<vmem>>, vector<1x18x128xf32>,
    return
  }
  func.func @transform_0(%arg0: i32, %arg1: i32) -> (i32, i32, i32) {
    %c0_i32 = arith.constant 0 : i32
    %c0_i32_0 = arith.constant 0 : i32
    return %arg0, %c0_i32, %arg1 : i32, i32, i32
  }
  func.func @transform_1(%arg0: i32, %arg1: i32) -> (i32, i32) {
    %c0_i32 = arith.constant 0 : i32
    %c0_i32_0 = arith.constant 0 : i32
    %c0_i32_1 = arith.constant 0 : i32
    return %c0_i32, %c0_i32_0 : i32, i32
  }
  func.func @transform_2(%arg0: i32, %arg1: i32) -> (i32, i32, i32) {
    %c0_i32 = arith.constant 0 : i32
    %c0_i32_0 = arith.constant 0 : i32
    return %arg0, %c0_i32, %arg1 : i32, i32, i32
  }
}

</mosaic_0001>

<llo_original>
// kernel: lifting_convolution_forward.1
$region0: #{lifting_convolution_forward.1}
  #allocation0 [shape = 'u32[]', space=smem, size = 0x4, offset = 0x4, fixed_abs, tag = 'smem constant byte address 0x4 - core index']
  #allocation1 [shape = 'u32[72,128]{1,0:T(1,128)}', space=vmem, size = 0x9000, scoped, tag = 'internal scratch']
  #allocation2 [shape = 'bf16[80,128]{1,0:T(8,128)(2,1)}', space=vmem, size = 0x5000, scoped, tag = 'scratch operand']
  %s0 = inlined_call_operand.vmem [shape: bf16[2,16,256], index: 0, kind: input, shape index: {}]
  %s1 = inlined_call_operand.vmem [shape: bf16[18,80], index: 1, kind: input, shape index: {}]
  %s2 = inlined_call_operand.vmem [shape: f32[2,18,128], index: 2, kind: output, shape index: {}]
  %s3 = sld [smem:[#allocation0]]
  $region41: #{lifting_convolution_forward.1} parent=0
    _
  %s5 = ssub.s32 1, %s3
  %s6 = scalar_select 0, %s5, %s3
  loop: start=0, step=1, limit=4
  $region2: #{lifting_convolution_forward.1} parent=0 // loop_pre_header
    _
  $region3: #{lifting_convolution_forward.1} parent=0 // loop_header
    %s8 = sphi 0, %s12
    %p9 = scmp.ge.s32.totalorder %s8, 4
    %s15 = sphi 0, %s27
    %s16 = sphi 0, %s23
    %s17 = sphi 0, %s15
    %s18 = sphi 0, %s16
    %s19 = sphi 0, %s17
    %s20 = sphi 0, %s18
    %s32 = sphi 0, %s34
    %s35 = sphi 0, %s32
    %s36 = sphi 0, %s35
    %s52 = sphi 0, %s36
    %s56 = sphi 0, %s56
    %s58 = sphi 0, %s56
    %s59 = sphi 0, %s58
    %s73 = sphi 0, %s59
    %s81 = sphi 0, %s83
    %s84 = sphi 0, %s81
    %s85 = sphi 0, %s84
    %s101 = sphi 0, %s85
  $region4: #{lifting_convolution_forward.1} parent=0 // loop_header_branch
    %11 = sbr.rel (%p9) target = $region8
  $region5: #{lifting_convolution_forward.1} parent=0 // loop_body
    %s13 = ssub.s32 %s8, 1
    %s14 = ssub.s32 %s8, 2
    %s21 = sadd.s32 1, %s16
    %p22 = scmp.ge.s32.totalorder %s21, 1
    %s23 = scalar_select %p22, 0, %s21
    %s24 = sadd.s32 1, %s15
    %s25 = scalar_select %p22, %s24, %s15
    %p26 = scmp.ge.s32.totalorder %s25, 2
    %s27 = scalar_select %p26, 0, %s25
    %s28 = ssub.s32 %s15, %s27
    %s29 = ssub.s32 %s16, %s23
    %s30 = sor.u32 %s28, %s29
    %p31 = scmp.eq.s32.totalorder %s30, 0
    %s33 = sadd.s32 %s32, 1
    %s34 = scalar_select %p31, %s32, %s33
    %p37 = pneg %p31
    %p38 = scmp.eq.s32.totalorder %s8, 1
    %p39 = por %p37, %p38
    %p40 = scmp.ne.s32.totalorder %s32, %s35
    %p41 = scmp.eq.s32.totalorder %s8, 0
    %p42 = por %p40, %p41
    %p43 = scmp.ne.s32.totalorder %s32, %s35
    %p44 = scmp.eq.s32.totalorder %s13, 1
    %p45 = por %p43, %p44
    %p46 = scmp.ne.s32.totalorder %s35, %s36
    %p47 = scmp.eq.s32.totalorder %s13, 0
    %p48 = por %p46, %p47
    %p49 = scmp.ne.s32.totalorder %s35, %s36
    %p50 = scmp.eq.s32.totalorder %s14, 1
    %p51 = por %p49, %p50
    %p53 = scmp.ne.s32.totalorder %s36, %s52
    %p54 = scmp.eq.s32.totalorder %s14, 0
    %p55 = por %p53, %p54
    %s57 = sadd.s32 %s56, 1
    %p60 = scmp.eq.s32.totalorder %s8, 1
    %p61 = scmp.ne.s32.totalorder %s56, %s58
    %p62 = scmp.eq.s32.totalorder %s8, 0
    %p63 = por %p61, %p62
    %p64 = scmp.ne.s32.totalorder %s56, %s58
    %p65 = scmp.eq.s32.totalorder %s13, 1
    %p66 = por %p64, %p65
    %p67 = scmp.ne.s32.totalorder %s58, %s59
    %p68 = scmp.eq.s32.totalorder %s13, 0
    %p69 = por %p67, %p68
    %p70 = scmp.ne.s32.totalorder %s58, %s59
    %p71 = scmp.eq.s32.totalorder %s14, 1
    %p72 = por %p70, %p71
    %p74 = scmp.ne.s32.totalorder %s59, %s73
    %p75 = scmp.eq.s32.totalorder %s14, 0
    %p76 = por %p74, %p75
    %s77 = ssub.s32 %s15, %s27
    %s78 = ssub.s32 %s16, %s23
    %s79 = sor.u32 %s77, %s78
    %p80 = scmp.eq.s32.totalorder %s79, 0
    %s82 = sadd.s32 %s81, 1
    %s83 = scalar_select %p80, %s81, %s82
    %p86 = pneg %p80
    %p87 = scmp.eq.s32.totalorder %s8, 1
    %p88 = por %p86, %p87
    %p89 = scmp.ne.s32.totalorder %s81, %s84
    %p90 = scmp.eq.s32.totalorder %s8, 0
    %p91 = por %p89, %p90
    %p92 = scmp.ne.s32.totalorder %s81, %s84
    %p93 = scmp.eq.s32.totalorder %s13, 1
    %p94 = por %p92, %p93
    %p95 = scmp.ne.s32.totalorder %s84, %s85
    %p96 = scmp.eq.s32.totalorder %s13, 0
    %p97 = por %p95, %p96
    %p98 = scmp.ne.s32.totalorder %s84, %s85
    %p99 = scmp.eq.s32.totalorder %s14, 1
    %p100 = por %p98, %p99
    %p102 = scmp.ne.s32.totalorder %s85, %s101
    %p103 = scmp.eq.s32.totalorder %s14, 0
    %p104 = por %p102, %p103
    %p105 = scmp.le.s32.totalorder 1, %s8
    %p106 = scmp.lt.s32.totalorder %s8, 3
    %p107 = pnand %p105, %p106
    %p108 = pneg %p107
    // Predicated region
    $region9: #{lifting_convolution_forward.1} parent=5 // pred_check
      _
    $region10: #{lifting_convolution_forward.1} parent=5 // pred_check_branch
      %110 = sbr.rel (%p107) target = $region12
    $region11: #{lifting_convolution_forward.1} parent=5 // pred_region
      %s111 = ssub.s32 %s8, 1
      // Predicated region
      $region13: #{lifting_convolution_forward.1} parent=11 // pred_check
        %p112 = pneg %p69
      $region14: #{lifting_convolution_forward.1} parent=11 // pred_check_branch
        %114 = sbr.rel (%p112) target = $region16
      $region15: #{lifting_convolution_forward.1} parent=11 // pred_region
        _
      $region16: #{lifting_convolution_forward.1} parent=11 // pred_fallthru
        _
    $region12: #{lifting_convolution_forward.1} parent=5 // pred_fallthru
      _
    %p115 = scmp.lt.s32.totalorder %s8, 2
    // Predicated region
    $region17: #{lifting_convolution_forward.1} parent=5 // pred_check
      %p116 = pneg %p115
    $region18: #{lifting_convolution_forward.1} parent=5 // pred_check_branch
      %118 = sbr.rel (%p116) target = $region20
    $region19: #{lifting_convolution_forward.1} parent=5 // pred_region
      // Predicated region
      $region21: #{lifting_convolution_forward.1} parent=19 // pred_check
        %p119 = pneg %p42
      $region22: #{lifting_convolution_forward.1} parent=19 // pred_check_branch
        %121 = sbr.rel (%p119) target = $region24
      $region23: #{lifting_convolution_forward.1} parent=19 // pred_region
        %s122 = smul.u32 2, %s16
        %p123 = scmp.lt.s32.totalorder %s15, 1
        %s124 = scalar_select %p123, %s15, 1
        %p125 = scmp.lt.s32.totalorder %s122, 1
        %s126 = scalar_select %p125, %s122, 1
        %s127 = smul.addr %s124, 4
        %s128 = sadd.s32 %s126, %s127
        %s129 = smul.addr %s128, 4
        %s130 = scalar_lea.vmem %s0, %s129
        %s131 = smul.u32 2, %s16
      $region24: #{lifting_convolution_forward.1} parent=19 // pred_fallthru
        _
    $region20: #{lifting_convolution_forward.1} parent=5 // pred_fallthru
      _
    %p132 = scmp.le.s32.totalorder 1, %s8
    %p133 = scmp.lt.s32.totalorder %s8, 3
    %p134 = pnand %p132, %p133
    %p135 = pneg %p134
    // Predicated region
    $region25: #{lifting_convolution_forward.1} parent=5 // pred_check
      _
    $region26: #{lifting_convolution_forward.1} parent=5 // pred_check_branch
      %137 = sbr.rel (%p134) target = $region28
    $region27: #{lifting_convolution_forward.1} parent=5 // pred_region
      %s138 = ssub.s32 %s8, 1
      %s139 = smul.u32 2, %s18
      %p140 = scmp.lt.s32.totalorder %s17, 1
      %s141 = scalar_select %p140, %s17, 1
      %p142 = scmp.lt.s32.totalorder %s139, 1
      %s143 = scalar_select %p142, %s139, 1
      %s144 = smul.addr %s141, 4
      %s145 = sadd.s32 %s143, %s144
      %s146 = smul.addr %s145, 4
      %s147 = scalar_lea.vmem %s0, %s146
      %p148 = pneg %p48
      %p149 = pneg %p45
      %p150 = pneg %p69
      %p151 = pneg %p66
      %p152 = pneg %p97
      %p153 = pneg %p94
      %p154 = scmp.lt.s32.totalorder %s17, 1
      %s155 = scalar_select %p154, %s17, 1
      %p156 = scmp.lt.s32.totalorder %s18, 0
      %s157 = scalar_select %p156, %s18, 0
      %s158 = smul.addr %s155, 3
      %s159 = sadd.s32 %s157, %s158
      %s160 = smul.addr %s159, 8
      %s161 = scalar_lea.vmem %s2, %s160
      %s162 = smul.u32 2, %s18
      %p163 = scmp.lt.s32.totalorder %s17, 1
      %s164 = scalar_select %p163, %s17, 1
      %p165 = scmp.lt.s32.totalorder %s162, 1
      %s166 = scalar_select %p165, %s162, 1
      %s167 = smul.addr %s164, 4
      %s168 = sadd.s32 %s166, %s167
      %s169 = smul.addr %s168, 4
      %s170 = scalar_lea.vmem %s0, %s169
      %s171 = smul.u32 2, %s18
      %p172 = scmp.lt.s32.totalorder %s17, 1
      %s173 = scalar_select %p172, %s17, 1
      %p174 = scmp.lt.s32.totalorder %s18, 0
      %s175 = scalar_select %p174, %s18, 0
      %s176 = smul.addr %s173, 3
      %s177 = sadd.s32 %s175, %s176
      %s178 = smul.addr %s177, 8
      %s179 = scalar_lea.vmem %s2, %s178
      %v181 = vld [vmem:[%s170] sm:$0xff]
      %v182 = vld [vmem:[%s170 + $0x8] sm:$0xff]
      %183 = vst [vmem:[#allocation2] sm:$0xf] %v181
      %184 = vst [vmem:[#allocation2 + $0x4] sm:$0xf] %v182
      %187 = vrot.lane.b32.xlu0 %v181, 127
      %v188 = vpop.permute.xlu0 %187
      %189 = vrot.lane.b32.xlu0 %v182, 127
      %v190 = vpop.permute.xlu0 %189
      %v191 = vrot.slane %v188, 4
      %v192 = vrot.slane %v190, 4
      %vm193 = vcmask 1039360
      %v194 = vsel %vm193, %v188, %v191
      %v195 = vsel %vm193, %v190, %v192
      %198 = vst [vmem:[#allocation2 + $0x8] sm:$0xf] %v194
      %199 = vst [vmem:[#allocation2 + $0xc] sm:$0xf] %v195
      %200 = vrot.lane.b32.xlu0 %v181, 126
      %v201 = vpop.permute.xlu0 %200
      %202 = vrot.lane.b32.xlu0 %v182, 126
      %v203 = vpop.permute.xlu0 %202
      %v204 = vrot.slane %v201, 4
      %v205 = vrot.slane %v203, 4
      %vm206 = vcmask 1031168
      %v207 = vsel %vm206, %v201, %v204
      %v208 = vsel %vm206, %v203, %v205
      %211 = vst [vmem:[#allocation2 + $0x10] sm:$0xf] %v207
      %212 = vst [vmem:[#allocation2 + $0x14] sm:$0xf] %v208
      %213 = vrot.lane.b32.xlu0 %v181, 125
      %v214 = vpop.permute.xlu0 %213
      %215 = vrot.lane.b32.xlu0 %v182, 125
      %v216 = vpop.permute.xlu0 %215
      %v217 = vrot.slane %v214, 4
      %v218 = vrot.slane %v216, 4
      %vm219 = vcmask 1022976
      %v220 = vsel %vm219, %v214, %v217
      %v221 = vsel %vm219, %v216, %v218
      %224 = vst [vmem:[#allocation2 + $0x18] sm:$0xf] %v220
      %225 = vst [vmem:[#allocation2 + $0x1c] sm:$0xf] %v221
      %226 = vrot.lane.b32.xlu0 %v181, 124
      %v227 = vpop.permute.xlu0 %226
      %228 = vrot.lane.b32.xlu0 %v182, 124
      %v229 = vpop.permute.xlu0 %228
      %v230 = vrot.slane %v227, 4
      %v231 = vrot.slane %v229, 4
      %vm232 = vcmask 1014784
      %v233 = vsel %vm232, %v227, %v230
      %v234 = vsel %vm232, %v229, %v231
      %237 = vst [vmem:[#allocation2 + $0x20] sm:$0xf] %v233
      %238 = vst [vmem:[#allocation2 + $0x24] sm:$0xf] %v234
      %v239 = vld [vmem:[%s1] sm:$0xf]
      %v240 = vld [vmem:[%s1 + $0x4] sm:$0xf]
      %v241 = vld [vmem:[%s1 + $0x8] sm:$0x1]
      %v242 = vld [vmem:[#allocation2] sm:$0xf]
      %v243 = vld [vmem:[#allocation2 + $0x4] sm:$0xf]
      %v244 = vld [vmem:[#allocation2 + $0x8] sm:$0xf]
      %v245 = vld [vmem:[#allocation2 + $0xc] sm:$0xf]
      %v246 = vld [vmem:[#allocation2 + $0x10] sm:$0xf]
      %v247 = vld [vmem:[#allocation2 + $0x14] sm:$0xf]
      %v248 = vld [vmem:[#allocation2 + $0x18] sm:$0xf]
      %v249 = vld [vmem:[#allocation2 + $0x1c] sm:$0xf]
      %v250 = vld [vmem:[#allocation2 + $0x20] sm:$0xf]
      %v251 = vld [vmem:[#allocation2 + $0x24] sm:$0xf]
      %v255 = vunpack.c.l.b16 %v239
      %v256 = vunpack.c.l.b16 %v240
      %v257 = vunpack.c.l.b16 %v241
      %v258 = vpack.c.b16 %v256, %v255
      %v259 = vpack.c.b16 %v257, %v257
      %v270 = vunpack.c.l.b16 %v242
      %v271 = vunpack.c.l.b16 %v243
      %v272 = vunpack.c.l.b16 %v244
      %v273 = vunpack.c.l.b16 %v245
      %v274 = vunpack.c.l.b16 %v246
      %v275 = vunpack.c.l.b16 %v247
      %v276 = vunpack.c.l.b16 %v248
      %v277 = vunpack.c.l.b16 %v249
      %v278 = vunpack.c.l.b16 %v250
      %v279 = vunpack.c.l.b16 %v251
      %v280 = vpack.c.b16 %v271, %v270
      %v281 = vpack.c.b16 %v273, %v272
      %v282 = vpack.c.b16 %v275, %v274
      %v283 = vpack.c.b16 %v277, %v276
      %v284 = vpack.c.b16 %v279, %v278
      %vm290 = vcmask 654336
      %v292 = vsel %vm290, %v258, 0
      %v295 = vsel %vm290, %v259, 0
      %297 = vmatpush.bf16.msra.mxu0 0
      %298 = vmatpush.bf16.msra.mxu0 0
      %299 = vmatpush.bf16.msra.mxu0 0
      %300 = vmatpush.bf16.msra.mxu0 %v284
      %301 = vmatpush.bf16.msra.mxu0 %v283
      %302 = vmatpush.bf16.msra.mxu0 %v282
      %303 = vmatpush.bf16.msra.mxu0 %v281
      %304 = vmatpush.bf16.msra.mxu0 %v280
      %305 = vmatmul.bf16.gmra.mxu0 %v292
      %v306 = vpop.f32.mrf.mxu0
      %v307 = vadd.f32 0.0, %v306
      %v308 = vpop.f32.mrf.mxu0
      %v309 = vadd.f32 0.0, %v308
      %310 = vmatmul.bf16.gmra.mxu0 %v295
      %v311 = vpop.f32.mrf.mxu0
      %v312 = vadd.f32 0.0, %v311
      %v313 = vpop.f32.mrf.mxu0
      %314 = vdwg.mxu0
      %315 = vst [vmem:[%s179] sm:$0xff] %v307
      %316 = vst [vmem:[%s179 + $0x8] sm:$0xff] %v309
      %317 = vst [vmem:[%s179 + $0x10] sm:$0x3] %v312
      %p318 = scmp.lt.s32.totalorder %s17, 1
      %s319 = scalar_select %p318, %s17, 1
      %p320 = scmp.lt.s32.totalorder %s18, 0
      %s321 = scalar_select %p320, %s18, 0
      %s322 = smul.addr %s319, 3
      %s323 = sadd.s32 %s321, %s322
      %s324 = smul.addr %s323, 8
      %s325 = scalar_lea.vmem %s2, %s324
      // Predicated region
      $region29: #{lifting_convolution_forward.1} parent=27 // pred_check
        %p326 = pneg %p94
      $region30: #{lifting_convolution_forward.1} parent=27 // pred_check_branch
        %328 = sbr.rel (%p326) target = $region32
      $region31: #{lifting_convolution_forward.1} parent=27 // pred_region
        _
      $region32: #{lifting_convolution_forward.1} parent=27 // pred_fallthru
        _
    $region28: #{lifting_convolution_forward.1} parent=5 // pred_fallthru
      _
    %p329 = scmp.le.s32.totalorder 2, %s8
    // Predicated region
    $region33: #{lifting_convolution_forward.1} parent=5 // pred_check
      %p330 = pneg %p329
    $region34: #{lifting_convolution_forward.1} parent=5 // pred_check_branch
      %332 = sbr.rel (%p330) target = $region36
    $region35: #{lifting_convolution_forward.1} parent=5 // pred_region
      %s333 = ssub.s32 %s8, 2
      // Predicated region
      $region37: #{lifting_convolution_forward.1} parent=35 // pred_check
        %p334 = pneg %p100
      $region38: #{lifting_convolution_forward.1} parent=35 // pred_check_branch
        %336 = sbr.rel (%p334) target = $region40
      $region39: #{lifting_convolution_forward.1} parent=35 // pred_region
        %p337 = scmp.lt.s32.totalorder %s19, 1
        %s338 = scalar_select %p337, %s19, 1
        %p339 = scmp.lt.s32.totalorder %s20, 0
        %s340 = scalar_select %p339, %s20, 0
        %s341 = smul.addr %s338, 3
        %s342 = sadd.s32 %s340, %s341
        %s343 = smul.addr %s342, 8
        %s344 = scalar_lea.vmem %s2, %s343
      $region40: #{lifting_convolution_forward.1} parent=35 // pred_fallthru
        _
    $region36: #{lifting_convolution_forward.1} parent=5 // pred_fallthru
      _
  $region6: #{lifting_convolution_forward.1} parent=0 // loop_footer
    %s12 = sadd.s32 1, %s8
  $region7: #{lifting_convolution_forward.1} parent=0 // loop_footer_branch
    %7 = sbr.rel target = $region3
  $region8: #{lifting_convolution_forward.1} parent=0 // loop_exit
    _

</llo_original>
